<compile_context>
chip_gen: v5e
topology: v5e:2x2
jax: 0.10.0
libtpu: 0.0.40
codegen_flags: <defaults>
</compile_context>

<pallas_src>
import jax
import jax.numpy as jnp
from jax.experimental import pallas as pl
from jax.experimental.pallas import tpu as pltpu

DT = 0.1        # integration timestep (deterministic constant)
LANE = 128      # lane width
_VMEM_BUDGET = 12 * 1024 * 1024   # per-step block budget (< v5e 16 MiB default)


# ----------------------------------------------------------------------------
# Tiling helpers
# ----------------------------------------------------------------------------
def _row_tile(R: int, per_row_bytes: int) -> tuple[int, int]:
    """Pick a sublane-row tile Rt and padded row count Rp (Rt divides Rp).

    Rt is a multiple of 8 sized so double-buffered in/out blocks plus scratch
    stay under _VMEM_BUDGET, capped at 512 rows, and chosen so the row axis has
    >= 4 grid steps when there is enough work (keeps both v7x cores pipelined).
    Small problems get a single full-extent block (legal for any R).
    """
    cap = min(512, max(8, (_VMEM_BUDGET // per_row_bytes) // 8 * 8))
    if R <= cap or R <= 32:
        return R, R                                   # one full-extent block
    quarter = ((R + 3) // 4 + 7) // 8 * 8             # >= 4 row tiles
    Rt = min(cap, quarter)
    Rp = pl.cdiv(R, Rt) * Rt
    return Rt, Rp


def _time_tile(T: int, max_tc: int = 8) -> int:
    """Largest divisor of T that is <= max_tc (falls back to 1 for primes)."""
    if T <= max_tc:
        return T
    for c in range(max_tc, 0, -1):
        if T % c == 0:
            return c
    return 1


def _pad_samples(x: jax.Array, n_target: int) -> jax.Array:
    """Pad the trailing (sample) axis up to n_target.  No-op when aligned."""
    n = x.shape[-1]
    if n == n_target:
        return x
    cfg = [(0, 0)] * (x.ndim - 1) + [(0, n_target - n)]
    return jnp.pad(x, cfg)


# ----------------------------------------------------------------------------
# Single-step forward: matches DynamicsModel.forward(state, control)
# ----------------------------------------------------------------------------
def _dynamics_kernel(s_ref, u_ref, out_ref):
    # s_ref  : (3, Rt, 128)  rows = [x, y, theta]
    # u_ref  : (2, Rt, 128)  rows = [v, w]
    # out_ref: (3, Rt, 128)  rows = [x', y', theta']
    x = s_ref[0]
    y = s_ref[1]
    th = s_ref[2]
    v = u_ref[0]
    w = u_ref[1]
    out_ref[0] = x + v * jnp.cos(th) * DT        # dense (Rt,128) slab stores
    out_ref[1] = y + v * jnp.sin(th) * DT
    out_ref[2] = th + w * DT


def dynamics_forward(state: jax.Array, control: jax.Array) -> jax.Array:
    """state: (3, N) f32, control: (2, N) f32 -> next state (3, N) f32."""
    assert state.shape[0] == 3 and control.shape[0] == 2
    assert control.shape[1] == state.shape[1]
    n = state.shape[1]

    R = pl.cdiv(n, LANE)
    per_row_bytes = 2 * (3 + 2 + 3) * LANE * 4        # dbl-buffered in + out
    Rt, Rp = _row_tile(R, per_row_bytes)
    Np = Rp * LANE

    s = _pad_samples(state.astype(jnp.float32), Np).reshape(3, Rp, LANE)
    u = _pad_samples(control.astype(jnp.float32), Np).reshape(2, Rp, LANE)

    out = pl.pallas_call(
        _dynamics_kernel,
        out_shape=jax.ShapeDtypeStruct((3, Rp, LANE), jnp.float32),
        grid_spec=pltpu.PrefetchScalarGridSpec(
            num_scalar_prefetch=0,
            grid=(Rp // Rt,),
            in_specs=[
                pl.BlockSpec((3, Rt, LANE), lambda i: (0, i, 0)),
                pl.BlockSpec((2, Rt, LANE), lambda i: (0, i, 0)),
            ],
            out_specs=pl.BlockSpec((3, Rt, LANE), lambda i: (0, i, 0)),
        ),
        compiler_params=pltpu.CompilerParams(
            dimension_semantics=("parallel",),
        ),
    )(s, u)

    out = out.reshape(3, Np)
    return out if Np == n else out[:, :n]


# ----------------------------------------------------------------------------
# Fused T-step rollout: time chunked in-kernel, state resident in VMEM
# ----------------------------------------------------------------------------
def _rollout_kernel(s0_ref, u_ref, traj_ref, st_ref):
    # s0_ref  : (3, Rt, 128)      initial state for this sample tile
    # u_ref   : (Tc, 2, Rt, 128)  controls for this time chunk
    # traj_ref: (Tc, 3, Rt, 128)  state after each control in the chunk
    # st_ref  : (3, Rt, 128)      VMEM-resident running state (carry)
    tc = pl.program_id(1)

    @pl.when(tc == 0)
    def _():
        st_ref[...] = s0_ref[...]

    x = st_ref[0]
    y = st_ref[1]
    th = st_ref[2]

    Tc = u_ref.shape[0]
    for t in range(Tc):                       # static unroll over the chunk
        v = u_ref[t, 0]
        w = u_ref[t, 1]
        x = x + v * jnp.cos(th) * DT          # uses theta BEFORE this step
        y = y + v * jnp.sin(th) * DT
        th = th + w * DT
        traj_ref[t, 0] = x.astype(traj_ref.dtype)
        traj_ref[t, 1] = y.astype(traj_ref.dtype)
        traj_ref[t, 2] = th.astype(traj_ref.dtype)

    # Write the carry back once per chunk (not once per timestep).
    st_ref[0] = x
    st_ref[1] = y
    st_ref[2] = th


def rollout_forward(state: jax.Array, controls: jax.Array,
                    out_dtype=jnp.float32) -> jax.Array:
    """state: (3, N), controls: (T, 2, N) -> trajectory (T, 3, N).

    traj[t] == forward applied t+1 times; the running state never round-trips
    HBM.  out_dtype=bfloat16 halves the dominant writeback stream if the MPPI
    cost function tolerates it.
    """
    assert state.shape[0] == 3
    T = controls.shape[0]
    assert controls.shape[1] == 2 and controls.shape[2] == state.shape[1]
    n = state.shape[1]

    Tc = _time_tile(T)
    R = pl.cdiv(n, LANE)
    # dbl-buffered (s0 + controls-chunk + traj-chunk) blocks + state scratch
    per_row_bytes = (2 * (3 + 5 * Tc) + 3) * LANE * 4
    Rt, Rp = _row_tile(R, per_row_bytes)
    Np = Rp * LANE

    s0 = _pad_samples(state.astype(jnp.float32), Np).reshape(3, Rp, LANE)
    u = _pad_samples(controls.astype(jnp.float32), Np).reshape(T, 2, Rp, LANE)

    traj = pl.pallas_call(
        _rollout_kernel,
        out_shape=jax.ShapeDtypeStruct((T, 3, Rp, LANE), out_dtype),
        grid_spec=pltpu.PrefetchScalarGridSpec(
            num_scalar_prefetch=0,
            grid=(Rp // Rt, T // Tc),                 # time axis innermost
            in_specs=[
                pl.BlockSpec((3, Rt, LANE), lambda i, t: (0, i, 0)),
                pl.BlockSpec((Tc, 2, Rt, LANE), lambda i, t: (t, 0, i, 0)),
            ],
            out_specs=pl.BlockSpec((Tc, 3, Rt, LANE), lambda i, t: (t, 0, i, 0)),
            scratch_shapes=[pltpu.VMEM((3, Rt, LANE), jnp.float32)],
        ),
        compiler_params=pltpu.CompilerParams(
            # Time carry lives in VMEM scratch: time MUST stay innermost and
            # "arbitrary"; sample tiles are independent ("parallel").
            dimension_semantics=("parallel", "arbitrary"),
        ),
    )(s0, u)

    traj = traj.reshape(T, 3, Np)
    return traj if Np == n else traj[:, :, :n]


# ----------------------------------------------------------------------------
# Pure-JAX references
# ----------------------------------------------------------------------------
def _reference(state, control):
    theta = state[2]
    v, w = control[0], control[1]
    return jnp.stack(
        [
            state[0] + v * jnp.cos(theta) * DT,
            state[1] + v * jnp.sin(theta) * DT,
            theta + w * DT,
        ],
        axis=0,
    )


def _rollout_reference(state, controls):
    def step(s, u):
        ns = _reference(s, u)
        return ns, ns

    _, traj = jax.lax.scan(step, state, controls)
    return traj


if __name__ == "__main__":
    key = jax.random.PRNGKey(0)
    k1, k2, k3, k4, k5 = jax.random.split(key, 5)

    N = 2048   # MPPI rollout samples (16 sublane rows of 128 lanes, no pad)
    T = 20     # MPPI horizon (chunked as 4 time-chunks of Tc=5 in-kernel)

    state = jax.random.normal(k1, (3, N), dtype=jnp.float32)
    control = jax.random.normal(k2, (2, N), dtype=jnp.float32)
    controls_h = jax.random.normal(k3, (T, 2, N), dtype=jnp.float32)

    # Single-step forward (module semantics), lane-aligned fast path.
    out = jax.block_until_ready(dynamics_forward(state, control))
    ref = _reference(state, control)
    assert out.shape == (3, N)
    assert jnp.allclose(out, ref, atol=1e-5, rtol=1e-5)

    # Single-step forward on a ragged sample count (exercises the pad path).
    n_ragged = 200
    s_r = jax.random.normal(k4, (3, n_ragged), dtype=jnp.float32)
    u_r = jax.random.normal(k5, (2, n_ragged), dtype=jnp.float32)
    out_r = jax.block_until_ready(dynamics_forward(s_r, u_r))
    assert out_r.shape == (3, n_ragged)
    assert jnp.allclose(out_r, _reference(s_r, u_r), atol=1e-5, rtol=1e-5)

    # Fused-horizon rollout (state resident in VMEM across time chunks).
    traj = jax.block_until_ready(rollout_forward(state, controls_h))
    traj_ref = _rollout_reference(state, controls_h)
    assert traj.shape == (T, 3, N)
    assert jnp.allclose(traj, traj_ref, atol=1e-4, rtol=1e-4)

    print("KERNEL_OK")
</pallas_src>

<mosaic_0001>
module attributes {stable_mosaic.version = 11 : i64} {
  func.func @_dynamics_kernel(%arg0: i32, %arg1: memref<3x16x128xf32, #tpu.memory_space<vmem>>, %arg2: memref<2x16x128xf32, #tpu.memory_space<vmem>>, %arg3: memref<3x16x128xf32, #tpu.memory_space<vmem>>) attributes {dimension_semantics = [#tpu.dimension_semantics<parallel>], iteration_bounds = array<i64: 1>, scalar_prefetch = 0 : i64, scratch_operands = 0 : i64, tpu.core_type = #tpu.core_type<tc>, window_params = [{transform_indices = @transform_0, window_bounds = array<i64: 3, 16, 128>}, {transform_indices = @transform_1, window_bounds = array<i64: 2, 16, 128>}, {transform_indices = @transform_2, window_bounds = array<i64: 3, 16, 128>}]} {
    %c0 = arith.constant 0 : index
    %c0_0 = arith.constant 0 : index
    %c0_1 = arith.constant 0 : index
    %0 = vector.load %arg1[%c0, %c0_0, %c0_1] : memref<3x16x128xf32, #tpu.memory_space<vmem>>, vector<1x16x128xf32>
    %1 = vector.shape_cast %0 : vector<1x16x128xf32> to vector<16x128xf32>
    %c1 = arith.constant 1 : index
    %c0_2 = arith.constant 0 : index
    %c0_3 = arith.constant 0 : index
    %2 = vector.load %arg1[%c1, %c0_2, %c0_3] : memref<3x16x128xf32, #tpu.memory_space<vmem>>, vector<1x16x128xf32>
    %3 = vector.shape_cast %2 : vector<1x16x128xf32> to vector<16x128xf32>
    %c2 = arith.constant 2 : index
    %c0_4 = arith.constant 0 : index
    %c0_5 = arith.constant 0 : index
    %4 = vector.load %arg1[%c2, %c0_4, %c0_5] : memref<3x16x128xf32, #tpu.memory_space<vmem>>, vector<1x16x128xf32>
    %5 = vector.shape_cast %4 : vector<1x16x128xf32> to vector<16x128xf32>
    %c0_6 = arith.constant 0 : index
    %c0_7 = arith.constant 0 : index
    %c0_8 = arith.constant 0 : index
    %6 = vector.load %arg2[%c0_6, %c0_7, %c0_8] : memref<2x16x128xf32, #tpu.memory_space<vmem>>, vector<1x16x128xf32>
    %7 = vector.shape_cast %6 : vector<1x16x128xf32> to vector<16x128xf32>
    %c1_9 = arith.constant 1 : index
    %c0_10 = arith.constant 0 : index
    %c0_11 = arith.constant 0 : index
    %8 = vector.load %arg2[%c1_9, %c0_10, %c0_11] : memref<2x16x128xf32, #tpu.memory_space<vmem>>, vector<1x16x128xf32>
    %9 = vector.shape_cast %8 : vector<1x16x128xf32> to vector<16x128xf32>
    %10 = math.cos %5 : vector<16x128xf32>
    %11 = arith.mulf %7, %10 : vector<16x128xf32>
    %cst = arith.constant 1.000000e-01 : f32
    %12 = vector.broadcast %cst : f32 to vector<16x128xf32>
    %13 = arith.mulf %11, %12 : vector<16x128xf32>
    %14 = arith.addf %1, %13 : vector<16x128xf32>
    %c0_12 = arith.constant 0 : index
    %c0_13 = arith.constant 0 : index
    %c0_14 = arith.constant 0 : index
    %15 = vector.load %arg3[%c0_12, %c0_13, %c0_14] : memref<3x16x128xf32, #tpu.memory_space<vmem>>, vector<1x16x128xf32>
    %16 = vector.shape_cast %15 : vector<1x16x128xf32> to vector<16x128xf32>
    %17 = vector.shape_cast %14 : vector<16x128xf32> to vector<1x16x128xf32>
    tpu.vector_store %arg3[%c0_12, %c0_13, %c0_14], %17 {strides = array<i32>} : memref<3x16x128xf32, #tpu.memory_space<vmem>>, vector<1x16x128xf32>,
    %18 = math.sin %5 : vector<16x128xf32>
    %19 = arith.mulf %7, %18 : vector<16x128xf32>
    %cst_15 = arith.constant 1.000000e-01 : f32
    %20 = vector.broadcast %cst_15 : f32 to vector<16x128xf32>
    %21 = arith.mulf %19, %20 : vector<16x128xf32>
    %22 = arith.addf %3, %21 : vector<16x128xf32>
    %c1_16 = arith.constant 1 : index
    %c0_17 = arith.constant 0 : index
    %c0_18 = arith.constant 0 : index
    %23 = vector.load %arg3[%c1_16, %c0_17, %c0_18] : memref<3x16x128xf32, #tpu.memory_space<vmem>>, vector<1x16x128xf32>
    %24 = vector.shape_cast %23 : vector<1x16x128xf32> to vector<16x128xf32>
    %25 = vector.shape_cast %22 : vector<16x128xf32> to vector<1x16x128xf32>
    tpu.vector_store %arg3[%c1_16, %c0_17, %c0_18], %25 {strides = array<i32>} : memref<3x16x128xf32, #tpu.memory_space<vmem>>, vector<1x16x128xf32>,
    %cst_19 = arith.constant 1.000000e-01 : f32
    %26 = vector.broadcast %cst_19 : f32 to vector<16x128xf32>
    %27 = arith.mulf %9, %26 : vector<16x128xf32>
    %28 = arith.addf %5, %27 : vector<16x128xf32>
    %c2_20 = arith.constant 2 : index
    %c0_21 = arith.constant 0 : index
    %c0_22 = arith.constant 0 : index
    %29 = vector.load %arg3[%c2_20, %c0_21, %c0_22] : memref<3x16x128xf32, #tpu.memory_space<vmem>>, vector<1x16x128xf32>
    %30 = vector.shape_cast %29 : vector<1x16x128xf32> to vector<16x128xf32>
    %31 = vector.shape_cast %28 : vector<16x128xf32> to vector<1x16x128xf32>
    tpu.vector_store %arg3[%c2_20, %c0_21, %c0_22], %31 {strides = array<i32>} : memref<3x16x128xf32, #tpu.memory_space<vmem>>, vector<1x16x128xf32>,
    return
  }
  func.func @transform_0(%arg0: i32) -> (i32, i32, i32) {
    %c0_i32 = arith.constant 0 : i32
    %c0_i32_0 = arith.constant 0 : i32
    %c0_i32_1 = arith.constant 0 : i32
    return %c0_i32, %arg0, %c0_i32_0 : i32, i32, i32
  }
  func.func @transform_1(%arg0: i32) -> (i32, i32, i32) {
    %c0_i32 = arith.constant 0 : i32
    %c0_i32_0 = arith.constant 0 : i32
    %c0_i32_1 = arith.constant 0 : i32
    return %c0_i32, %arg0, %c0_i32_0 : i32, i32, i32
  }
  func.func @transform_2(%arg0: i32) -> (i32, i32, i32) {
    %c0_i32 = arith.constant 0 : i32
    %c0_i32_0 = arith.constant 0 : i32
    %c0_i32_1 = arith.constant 0 : i32
    return %c0_i32, %arg0, %c0_i32_0 : i32, i32, i32
  }
}

</mosaic_0001>

<llo_original>
// kernel: tpu_custom_call.1
$region0: #{tpu_custom_call.1}
  #allocation0 [shape = 'u32[]', space=smem, size = 0x4, offset = 0x4, fixed_abs, tag = 'smem constant byte address 0x4 - core index']
  #allocation1 [shape = 'u32[72,128]{1,0:T(1,128)}', space=vmem, size = 0x9000, scoped, tag = 'internal scratch']
  %s0 = inlined_call_operand.hbm [shape: f32[3,16,128], index: 0, kind: input, shape index: {}]
  %s1 = inlined_call_operand.hbm [shape: f32[2,16,128], index: 1, kind: input, shape index: {}]
  %s2 = inlined_call_operand.hbm [shape: f32[3,16,128], index: 2, kind: output, shape index: {}]
  %s3 = sld [smem:[#allocation0]]
  $region26: #{tpu_custom_call.1} parent=0
    _
  %s5 = ssub.s32 1, %s3
  %s6 = scalar_select 0, %s5, %s3
  $region1: #{tpu_custom_call.1} parent=0
    #allocation2 [shape = 'u8[24576]{0}', space=vmem, size = 0x6000, scoped, tag = 'input window, operand 0, single buffered']
    #allocation3 [shape = 's32[1]{0}', space=sflag, size = 0x4, scoped, tag = 'scoped memory for tpu_custom_call.1']
    #allocation4 [shape = 's32[1]{0}', space=sflag, size = 0x4, scoped, tag = 'scoped memory for tpu_custom_call.1']
    #allocation5 [shape = 'u8[16384]{0}', space=vmem, size = 0x4000, scoped, tag = 'input window, operand 1, single buffered']
    #allocation6 [shape = 's32[1]{0}', space=sflag, size = 0x4, scoped, tag = 'scoped memory for tpu_custom_call.1']
    #allocation7 [shape = 'u8[24576]{0}', space=vmem, size = 0x6000, scoped, tag = 'output window, operand 0, single buffered']
    %7 = vsyncpa [#allocation3], 0
    %8 = vsyncpa [#allocation6], 0
    %9 = vsyncpa [#allocation4], 0
    // Predicated region
    $region2: #{tpu_custom_call.1} parent=1 // pred_check
      _
    $region3: #{tpu_custom_call.1} parent=1 // pred_check_branch
      %11 = sbr.rel (0) target = $region5
    $region4: #{tpu_custom_call.1} parent=1 // pred_region
      %13 = vsyncadd [#allocation3], 0
      %s14 = sshll.u32 %s0, 4
      %s15 = int_to_ptr.hbm [resolvable:$true] %s14
      %s16 = sshll.u32 [#allocation2], 4
      %s17 = int_to_ptr.vmem [resolvable:$true] %s16
      %22 = dma.hbm_to_vmem [thread:$0]  %s15, 768, %s17, [#allocation3], 128, 128, 8
    $region5: #{tpu_custom_call.1} parent=1 // pred_fallthru
      _
    // Predicated region
    $region6: #{tpu_custom_call.1} parent=1 // pred_check
      _
    $region7: #{tpu_custom_call.1} parent=1 // pred_check_branch
      %24 = sbr.rel (0) target = $region9
    $region8: #{tpu_custom_call.1} parent=1 // pred_region
      %26 = vsyncadd [#allocation6], 0
      %s27 = sshll.u32 %s1, 4
      %s28 = int_to_ptr.hbm [resolvable:$true] %s27
      %s29 = sshll.u32 [#allocation5], 4
      %s30 = int_to_ptr.vmem [resolvable:$true] %s29
      %35 = dma.hbm_to_vmem [thread:$0]  %s28, 512, %s30, [#allocation6], 128, 128, 8
    $region9: #{tpu_custom_call.1} parent=1 // pred_fallthru
      _
    // Predicated region
    $region10: #{tpu_custom_call.1} parent=1 // pred_check
      _
    $region11: #{tpu_custom_call.1} parent=1 // pred_check_branch
      %37 = sbr.rel (0) target = $region13
    $region12: #{tpu_custom_call.1} parent=1 // pred_region
      %39 = dma.done [#allocation3], 768
    $region13: #{tpu_custom_call.1} parent=1 // pred_fallthru
      _
    // Predicated region
    $region14: #{tpu_custom_call.1} parent=1 // pred_check
      _
    $region15: #{tpu_custom_call.1} parent=1 // pred_check_branch
      %41 = sbr.rel (0) target = $region17
    $region16: #{tpu_custom_call.1} parent=1 // pred_region
      %43 = dma.done [#allocation6], 512
    $region17: #{tpu_custom_call.1} parent=1 // pred_fallthru
      _
    %v44 = vld [vmem:[#allocation2] sm:$0xff]
    %v45 = vld [vmem:[#allocation2 + $0x8] sm:$0xff]
    %s46 = scalar_lea.vmem [#allocation2], 16
    %v47 = vld [vmem:[%s46] sm:$0xff]
    %v48 = vld [vmem:[%s46 + $0x8] sm:$0xff]
    %s49 = scalar_lea.vmem [#allocation2], 32
    %v50 = vld [vmem:[%s49] sm:$0xff]
    %v51 = vld [vmem:[%s49 + $0x8] sm:$0xff]
    %v52 = vld [vmem:[#allocation5] sm:$0xff]
    %v53 = vld [vmem:[#allocation5 + $0x8] sm:$0xff]
    %s54 = scalar_lea.vmem [#allocation5], 16
    %v55 = vld [vmem:[%s54] sm:$0xff]
    %v56 = vld [vmem:[%s54 + $0x8] sm:$0xff]
    %v57 = vand.u32 2147483647, %v50
    %vm58 = vcmp.le.f32.partialorder %v57, 0.7853982
    %vm59 = vcmp.lt.s32.totalorder %v50, 0
    %v60 = vand.u32 %v50, 2139095040
    %v61 = vshrl.u32 %v60, 23
    %v62 = vsub.s32 %v61, 127
    %v63 = vand.u32 2147483647, %v50
    %v64 = vand.u32 %v63, 8388607
    %v65 = vor.u32 %v64, 8388608
    %v66 = vsub.s32 0, %v65
    %v67 = vadd.s32 %v62, 1
    %vm68 = vcmp.gt.s32.totalorder %v67, 0
    %v69 = vsel %vm68, %v67, 0
    %v70 = vshrl.u32 %v69, 5
    %v71 = vand.u32 %v69, 31
    %v72 = vsub.s32 32, %v71
    %v73 = vshrl.u32 683565275, %v72
    %v74 = vshll.u32 683565275, %v71
    %v75 = vshrl.u32 2475754826, %v72
    %v76 = vor.u32 %v74, %v75
    %v77 = vshll.u32 2475754826, %v71
    %v78 = vshrl.u32 2131351028, %v72
    %v79 = vor.u32 %v77, %v78
    %v80 = vshll.u32 2131351028, %v71
    %v81 = vshrl.u32 2102212464, %v72
    %v82 = vor.u32 %v80, %v81
    %v83 = vshll.u32 2102212464, %v71
    %v84 = vshrl.u32 920167782, %v72
    %v85 = vor.u32 %v83, %v84
    %v86 = vshll.u32 920167782, %v71
    %v87 = vshrl.u32 1326507024, %v72
    %v88 = vor.u32 %v86, %v87
    %vm89 = vcmp.lt.s32.totalorder %v70, 1
    %vm90 = vcmp.lt.s32.totalorder %v70, 2
    %vm91 = vcmp.lt.s32.totalorder %v70, 3
    %vm92 = vcmp.lt.s32.totalorder %v70, 4
    %v93 = vsel %vm89, %v73, %v76
    %v94 = vsel %vm92, %v82, 2102212464
    %v95 = vsel %vm91, %v79, %v94
    %v96 = vsel %vm90, %v93, %v95
    %v97 = vsel %vm89, %v76, %v79
    %v98 = vsel %vm92, %v85, 920167782
    %v99 = vsel %vm91, %v82, %v98
    %v100 = vsel %vm90, %v97, %v99
    %v101 = vsel %vm89, %v79, %v82
    %v102 = vsel %vm92, %v88, 1326507024
    %v103 = vsel %vm91, %v85, %v102
    %v104 = vsel %vm90, %v101, %v103
    %v105 = vshll.u32 %v65, 8
    %v106 = vand.u32 %v105, 65535
    %v107 = vshrl.u32 %v105, 16
    %v108 = vand.u32 %v104, 65535
    %v109 = vshrl.u32 %v104, 16
    %v110 = vmul.u32 %v106, %v108
    %v111 = vmul.u32 %v106, %v109
    %v112 = vmul.u32 %v107, %v108
    %v113 = vmul.u32 %v107, %v109
    %v114 = vshll.u32 %v111, 16
    %v115 = vshrl.u32 %v111, 16
    %v116 = vshll.u32 %v112, 16
    %v117 = vshrl.u32 %v112, 16
    %vm118 = vc.u32 %v110, %v114
    %v119 = vsel %vm118, 1, 0
    %v120 = vadd.s32 %v110, %v114
    %v121 = vadd.s32 %v113, %v119
    %vm122 = vc.u32 %v120, %v116
    %v123 = vsel %vm122, 1, 0
    %v124 = vadd.s32 %v120, %v116
    %v125 = vadd.s32 %v121, %v123
    %v126 = vadd.s32 %v125, %v115
    %v127 = vadd.s32 %v126, %v117
    %v128 = vand.u32 %v105, 65535
    %v129 = vshrl.u32 %v105, 16
    %v130 = vand.u32 %v100, 65535
    %v131 = vshrl.u32 %v100, 16
    %v132 = vmul.u32 %v128, %v130
    %v133 = vmul.u32 %v128, %v131
    %v134 = vmul.u32 %v129, %v130
    %v135 = vmul.u32 %v129, %v131
    %v136 = vshll.u32 %v133, 16
    %v137 = vshrl.u32 %v133, 16
    %v138 = vshll.u32 %v134, 16
    %v139 = vshrl.u32 %v134, 16
    %vm140 = vc.u32 %v132, %v136
    %v141 = vsel %vm140, 1, 0
    %v142 = vadd.s32 %v132, %v136
    %v143 = vadd.s32 %v135, %v141
    %vm144 = vc.u32 %v142, %v138
    %v145 = vsel %vm144, 1, 0
    %v146 = vadd.s32 %v142, %v138
    %v147 = vadd.s32 %v143, %v145
    %v148 = vadd.s32 %v147, %v137
    %v149 = vadd.s32 %v148, %v139
    %v150 = vmul.u32 %v105, %v96
    %v151 = vadd.s32 %v127, %v146
    %vm152 = vc.u32 %v127, %v146
    %v153 = vadd.s32 %v149, 1
    %v154 = vsel %vm152, %v153, %v149
    %v155 = vadd.s32 %v150, %v154
    %v156 = vadd.s32 %v155, 536870912
    %v157 = vshrl.u32 %v156, 30
    %v158 = vshll.u32 %v157, 30
    %v159 = vsub.s32 %v155, %v158
    %vm160 = vcmp.lt.s32.totalorder %v159, 0
    %v161 = vsub.s32 0, %v159
    %v162 = vsel %vm160, %v161, %v159
    %v163 = vclz %v162
    %v164 = vsub.s32 %v163, 2
    %vm165 = vcmp.gt.s32.totalorder 0, %v164
    %v166 = vsel %vm165, 0, %v164
    %v167 = vsub.s32 32, %v166
    %v168 = vshll.u32 %v159, %v166
    %v169 = vshrl.u32 %v151, %v167
    %v170 = vor.u32 %v168, %v169
    %v171 = vsub.s32 4294967266, %v166
    %v172 = vadd.s32 %v171, 127
    %v173 = vshll.u32 %v172, 23
    %v174 = vor.u32 4788187, %v173
    %v175 = vand.u32 2147483647, %v174
    %v177 = vcvt.s32.f32 %v170
    %v178 = vmul.f32 %v177, %v175
    %v179 = vxor.u32 %v178, 2147483648
    %v180 = vsel %vm59, %v179, %v178
    %v181 = vsub.s32 4, %v157
    %v182 = vsel %vm59, %v181, %v157
    %v183 = vsel %vm58, %v50, %v180
    %v184 = vsel %vm58, 0, %v182
    %v185 = vmul.f32 %v183, %v183
    %v186 = vmul.f32 %v185, -0.001358992
    %v187 = vadd.f32 %v186, 0.041655596
    %v188 = vmul.f32 %v185, %v187
    %v189 = vadd.f32 %v188, -0.4999988
    %v190 = vmul.f32 %v185, %v189
    %v191 = vadd.f32 1.0, %v190
    %v192 = vmul.f32 %v183, %v183
    %v193 = vmul.f32 %v192, -0.00019511016
    %v194 = vadd.f32 %v193, 0.008332121
    %v195 = vmul.f32 %v192, %v194
    %v196 = vadd.f32 %v195, -0.16666654
    %v197 = vmul.f32 %v192, %v196
    %v198 = vadd.f32 %v197, 1.0
    %v199 = vmul.f32 %v198, %v183
    %vm200 = vweird.f32 %v50
    %v201 = vand.u32 %v184, 3
    %vm202 = vcmp.lt.s32.totalorder %v201, 2
    %vm203 = vcmp.eq.s32.totalorder %v201, 0
    %v204 = vxor.u32 %v199, 2147483648
    %v205 = vsel %vm203, %v191, %v204
    %vm206 = vcmp.eq.s32.totalorder %v201, 2
    %v207 = vxor.u32 %v191, 2147483648
    %v208 = vsel %vm206, %v207, %v199
    %v209 = vsel %vm202, %v205, %v208
    %v210 = vsel %vm200, nan, %v209
    %v211 = vand.u32 2147483647, %v51
    %vm212 = vcmp.le.f32.partialorder %v211, 0.7853982
    %vm213 = vcmp.lt.s32.totalorder %v51, 0
    %v214 = vand.u32 %v51, 2139095040
    %v215 = vshrl.u32 %v214, 23
    %v216 = vsub.s32 %v215, 127
    %v217 = vand.u32 2147483647, %v51
    %v218 = vand.u32 %v217, 8388607
    %v219 = vor.u32 %v218, 8388608
    %v220 = vsub.s32 0, %v219
    %v221 = vadd.s32 %v216, 1
    %vm222 = vcmp.gt.s32.totalorder %v221, 0
    %v223 = vsel %vm222, %v221, 0
    %v224 = vshrl.u32 %v223, 5
    %v225 = vand.u32 %v223, 31
    %v226 = vsub.s32 32, %v225
    %v227 = vshrl.u32 683565275, %v226
    %v228 = vshll.u32 683565275, %v225
    %v229 = vshrl.u32 2475754826, %v226
    %v230 = vor.u32 %v228, %v229
    %v231 = vshll.u32 2475754826, %v225
    %v232 = vshrl.u32 2131351028, %v226
    %v233 = vor.u32 %v231, %v232
    %v234 = vshll.u32 2131351028, %v225
    %v235 = vshrl.u32 2102212464, %v226
    %v236 = vor.u32 %v234, %v235
    %v237 = vshll.u32 2102212464, %v225
    %v238 = vshrl.u32 920167782, %v226
    %v239 = vor.u32 %v237, %v238
    %v240 = vshll.u32 920167782, %v225
    %v241 = vshrl.u32 1326507024, %v226
    %v242 = vor.u32 %v240, %v241
    %vm243 = vcmp.lt.s32.totalorder %v224, 1
    %vm244 = vcmp.lt.s32.totalorder %v224, 2
    %vm245 = vcmp.lt.s32.totalorder %v224, 3
    %vm246 = vcmp.lt.s32.totalorder %v224, 4
    %v247 = vsel %vm243, %v227, %v230
    %v248 = vsel %vm246, %v236, 2102212464
    %v249 = vsel %vm245, %v233, %v248
    %v250 = vsel %vm244, %v247, %v249
    %v251 = vsel %vm243, %v230, %v233
    %v252 = vsel %vm246, %v239, 920167782
    %v253 = vsel %vm245, %v236, %v252
    %v254 = vsel %vm244, %v251, %v253
    %v255 = vsel %vm243, %v233, %v236
    %v256 = vsel %vm246, %v242, 1326507024
    %v257 = vsel %vm245, %v239, %v256
    %v258 = vsel %vm244, %v255, %v257
    %v259 = vshll.u32 %v219, 8
    %v260 = vand.u32 %v259, 65535
    %v261 = vshrl.u32 %v259, 16
    %v262 = vand.u32 %v258, 65535
    %v263 = vshrl.u32 %v258, 16
    %v264 = vmul.u32 %v260, %v262
    %v265 = vmul.u32 %v260, %v263
    %v266 = vmul.u32 %v261, %v262
    %v267 = vmul.u32 %v261, %v263
    %v268 = vshll.u32 %v265, 16
    %v269 = vshrl.u32 %v265, 16
    %v270 = vshll.u32 %v266, 16
    %v271 = vshrl.u32 %v266, 16
    %vm272 = vc.u32 %v264, %v268
    %v273 = vsel %vm272, 1, 0
    %v274 = vadd.s32 %v264, %v268
    %v275 = vadd.s32 %v267, %v273
    %vm276 = vc.u32 %v274, %v270
    %v277 = vsel %vm276, 1, 0
    %v278 = vadd.s32 %v274, %v270
    %v279 = vadd.s32 %v275, %v277
    %v280 = vadd.s32 %v279, %v269
    %v281 = vadd.s32 %v280, %v271
    %v282 = vand.u32 %v259, 65535
    %v283 = vshrl.u32 %v259, 16
    %v284 = vand.u32 %v254, 65535
    %v285 = vshrl.u32 %v254, 16
    %v286 = vmul.u32 %v282, %v284
    %v287 = vmul.u32 %v282, %v285
    %v288 = vmul.u32 %v283, %v284
    %v289 = vmul.u32 %v283, %v285
    %v290 = vshll.u32 %v287, 16
    %v291 = vshrl.u32 %v287, 16
    %v292 = vshll.u32 %v288, 16
    %v293 = vshrl.u32 %v288, 16
    %vm294 = vc.u32 %v286, %v290
    %v295 = vsel %vm294, 1, 0
    %v296 = vadd.s32 %v286, %v290
    %v297 = vadd.s32 %v289, %v295
    %vm298 = vc.u32 %v296, %v292
    %v299 = vsel %vm298, 1, 0
    %v300 = vadd.s32 %v296, %v292
    %v301 = vadd.s32 %v297, %v299
    %v302 = vadd.s32 %v301, %v291
    %v303 = vadd.s32 %v302, %v293
    %v304 = vmul.u32 %v259, %v250
    %v305 = vadd.s32 %v281, %v300
    %vm306 = vc.u32 %v281, %v300
    %v307 = vadd.s32 %v303, 1
    %v308 = vsel %vm306, %v307, %v303
    %v309 = vadd.s32 %v304, %v308
    %v310 = vadd.s32 %v309, 536870912
    %v311 = vshrl.u32 %v310, 30
    %v312 = vshll.u32 %v311, 30
    %v313 = vsub.s32 %v309, %v312
    %vm314 = vcmp.lt.s32.totalorder %v313, 0
    %v315 = vsub.s32 0, %v313
    %v316 = vsel %vm314, %v315, %v313
    %v317 = vclz %v316
    %v318 = vsub.s32 %v317, 2
    %vm319 = vcmp.gt.s32.totalorder 0, %v318
    %v320 = vsel %vm319, 0, %v318
    %v321 = vsub.s32 32, %v320
    %v322 = vshll.u32 %v313, %v320
    %v323 = vshrl.u32 %v305, %v321
    %v324 = vor.u32 %v322, %v323
    %v325 = vsub.s32 4294967266, %v320
    %v326 = vadd.s32 %v325, 127
    %v327 = vshll.u32 %v326, 23
    %v328 = vor.u32 4788187, %v327
    %v329 = vand.u32 2147483647, %v328
    %v331 = vcvt.s32.f32 %v324
    %v332 = vmul.f32 %v331, %v329
    %v333 = vxor.u32 %v332, 2147483648
    %v334 = vsel %vm213, %v333, %v332
    %v335 = vsub.s32 4, %v311
    %v336 = vsel %vm213, %v335, %v311
    %v337 = vsel %vm212, %v51, %v334
    %v338 = vsel %vm212, 0, %v336
    %v339 = vmul.f32 %v337, %v337
    %v340 = vmul.f32 %v339, -0.001358992
    %v341 = vadd.f32 %v340, 0.041655596
    %v342 = vmul.f32 %v339, %v341
    %v343 = vadd.f32 %v342, -0.4999988
    %v344 = vmul.f32 %v339, %v343
    %v345 = vadd.f32 1.0, %v344
    %v346 = vmul.f32 %v337, %v337
    %v347 = vmul.f32 %v346, -0.00019511016
    %v348 = vadd.f32 %v347, 0.008332121
    %v349 = vmul.f32 %v346, %v348
    %v350 = vadd.f32 %v349, -0.16666654
    %v351 = vmul.f32 %v346, %v350
    %v352 = vadd.f32 %v351, 1.0
    %v353 = vmul.f32 %v352, %v337
    %vm354 = vweird.f32 %v51
    %v355 = vand.u32 %v338, 3
    %vm356 = vcmp.lt.s32.totalorder %v355, 2
    %vm357 = vcmp.eq.s32.totalorder %v355, 0
    %v358 = vxor.u32 %v353, 2147483648
    %v359 = vsel %vm357, %v345, %v358
    %vm360 = vcmp.eq.s32.totalorder %v355, 2
    %v361 = vxor.u32 %v345, 2147483648
    %v362 = vsel %vm360, %v361, %v353
    %v363 = vsel %vm356, %v359, %v362
    %v364 = vsel %vm354, nan, %v363
    %v365 = vmul.f32 %v52, %v210
    %v366 = vmul.f32 %v53, %v364
    %v367 = vmul.f32 %v365, 0.1
    %v368 = vmul.f32 %v366, 0.1
    %v369 = vadd.f32 %v44, %v367
    %v370 = vadd.f32 %v45, %v368
    %371 = vst [vmem:[#allocation7] sm:$0xff] %v369
    %372 = vst [vmem:[#allocation7 + $0x8] sm:$0xff] %v370
    %v373 = vand.u32 2147483647, %v50
    %vm374 = vcmp.le.f32.partialorder %v373, 0.7853982
    %vm375 = vcmp.lt.s32.totalorder %v50, 0
    %v376 = vand.u32 %v50, 2139095040
    %v377 = vshrl.u32 %v376, 23
    %v378 = vsub.s32 %v377, 127
    %v379 = vand.u32 2147483647, %v50
    %v380 = vand.u32 %v379, 8388607
    %v381 = vor.u32 %v380, 8388608
    %v382 = vsub.s32 0, %v381
    %v383 = vadd.s32 %v378, 1
    %vm384 = vcmp.gt.s32.totalorder %v383, 0
    %v385 = vsel %vm384, %v383, 0
    %v386 = vshrl.u32 %v385, 5
    %v387 = vand.u32 %v385, 31
    %v388 = vsub.s32 32, %v387
    %v389 = vshrl.u32 683565275, %v388
    %v390 = vshll.u32 683565275, %v387
    %v391 = vshrl.u32 2475754826, %v388
    %v392 = vor.u32 %v390, %v391
    %v393 = vshll.u32 2475754826, %v387
    %v394 = vshrl.u32 2131351028, %v388
    %v395 = vor.u32 %v393, %v394
    %v396 = vshll.u32 2131351028, %v387
    %v397 = vshrl.u32 2102212464, %v388
    %v398 = vor.u32 %v396, %v397
    %v399 = vshll.u32 2102212464, %v387
    %v400 = vshrl.u32 920167782, %v388
    %v401 = vor.u32 %v399, %v400
    %v402 = vshll.u32 920167782, %v387
    %v403 = vshrl.u32 1326507024, %v388
    %v404 = vor.u32 %v402, %v403
    %vm405 = vcmp.lt.s32.totalorder %v386, 1
    %vm406 = vcmp.lt.s32.totalorder %v386, 2
    %vm407 = vcmp.lt.s32.totalorder %v386, 3
    %vm408 = vcmp.lt.s32.totalorder %v386, 4
    %v409 = vsel %vm405, %v389, %v392
    %v410 = vsel %vm408, %v398, 2102212464
    %v411 = vsel %vm407, %v395, %v410
    %v412 = vsel %vm406, %v409, %v411
    %v413 = vsel %vm405, %v392, %v395
    %v414 = vsel %vm408, %v401, 920167782
    %v415 = vsel %vm407, %v398, %v414
    %v416 = vsel %vm406, %v413, %v415
    %v417 = vsel %vm405, %v395, %v398
    %v418 = vsel %vm408, %v404, 1326507024
    %v419 = vsel %vm407, %v401, %v418
    %v420 = vsel %vm406, %v417, %v419
    %v421 = vshll.u32 %v381, 8
    %v422 = vand.u32 %v421, 65535
    %v423 = vshrl.u32 %v421, 16
    %v424 = vand.u32 %v420, 65535
    %v425 = vshrl.u32 %v420, 16
    %v426 = vmul.u32 %v422, %v424
    %v427 = vmul.u32 %v422, %v425
    %v428 = vmul.u32 %v423, %v424
    %v429 = vmul.u32 %v423, %v425
    %v430 = vshll.u32 %v427, 16
    %v431 = vshrl.u32 %v427, 16
    %v432 = vshll.u32 %v428, 16
    %v433 = vshrl.u32 %v428, 16
    %vm434 = vc.u32 %v426, %v430
    %v435 = vsel %vm434, 1, 0
    %v436 = vadd.s32 %v426, %v430
    %v437 = vadd.s32 %v429, %v435
    %vm438 = vc.u32 %v436, %v432
    %v439 = vsel %vm438, 1, 0
    %v440 = vadd.s32 %v436, %v432
    %v441 = vadd.s32 %v437, %v439
    %v442 = vadd.s32 %v441, %v431
    %v443 = vadd.s32 %v442, %v433
    %v444 = vand.u32 %v421, 65535
    %v445 = vshrl.u32 %v421, 16
    %v446 = vand.u32 %v416, 65535
    %v447 = vshrl.u32 %v416, 16
    %v448 = vmul.u32 %v444, %v446
    %v449 = vmul.u32 %v444, %v447
    %v450 = vmul.u32 %v445, %v446
    %v451 = vmul.u32 %v445, %v447
    %v452 = vshll.u32 %v449, 16
    %v453 = vshrl.u32 %v449, 16
    %v454 = vshll.u32 %v450, 16
    %v455 = vshrl.u32 %v450, 16
    %vm456 = vc.u32 %v448, %v452
    %v457 = vsel %vm456, 1, 0
    %v458 = vadd.s32 %v448, %v452
    %v459 = vadd.s32 %v451, %v457
    %vm460 = vc.u32 %v458, %v454
    %v461 = vsel %vm460, 1, 0
    %v462 = vadd.s32 %v458, %v454
    %v463 = vadd.s32 %v459, %v461
    %v464 = vadd.s32 %v463, %v453
    %v465 = vadd.s32 %v464, %v455
    %v466 = vmul.u32 %v421, %v412
    %v467 = vadd.s32 %v443, %v462
    %vm468 = vc.u32 %v443, %v462
    %v469 = vadd.s32 %v465, 1
    %v470 = vsel %vm468, %v469, %v465
    %v471 = vadd.s32 %v466, %v470
    %v472 = vadd.s32 %v471, 536870912
    %v473 = vshrl.u32 %v472, 30
    %v474 = vshll.u32 %v473, 30
    %v475 = vsub.s32 %v471, %v474
    %vm476 = vcmp.lt.s32.totalorder %v475, 0
    %v477 = vsub.s32 0, %v475
    %v478 = vsel %vm476, %v477, %v475
    %v479 = vclz %v478
    %v480 = vsub.s32 %v479, 2
    %vm481 = vcmp.gt.s32.totalorder 0, %v480
    %v482 = vsel %vm481, 0, %v480
    %v483 = vsub.s32 32, %v482
    %v484 = vshll.u32 %v475, %v482
    %v485 = vshrl.u32 %v467, %v483
    %v486 = vor.u32 %v484, %v485
    %v487 = vsub.s32 4294967266, %v482
    %v488 = vadd.s32 %v487, 127
    %v489 = vshll.u32 %v488, 23
    %v490 = vor.u32 4788187, %v489
    %v491 = vand.u32 2147483647, %v490
    %v493 = vcvt.s32.f32 %v486
    %v494 = vmul.f32 %v493, %v491
    %v495 = vxor.u32 %v494, 2147483648
    %v496 = vsel %vm375, %v495, %v494
    %v497 = vsub.s32 4, %v473
    %v498 = vsel %vm375, %v497, %v473
    %v499 = vsel %vm374, %v50, %v496
    %v500 = vsel %vm374, 0, %v498
    %v501 = vmul.f32 %v499, %v499
    %v502 = vmul.f32 %v501, -0.001358992
    %v503 = vadd.f32 %v502, 0.041655596
    %v504 = vmul.f32 %v501, %v503
    %v505 = vadd.f32 %v504, -0.4999988
    %v506 = vmul.f32 %v501, %v505
    %v507 = vadd.f32 1.0, %v506
    %v508 = vmul.f32 %v499, %v499
    %v509 = vmul.f32 %v508, -0.00019511016
    %v510 = vadd.f32 %v509, 0.008332121
    %v511 = vmul.f32 %v508, %v510
    %v512 = vadd.f32 %v511, -0.16666654
    %v513 = vmul.f32 %v508, %v512
    %v514 = vadd.f32 %v513, 1.0
    %v515 = vmul.f32 %v514, %v499
    %vm516 = vweird.f32 %v50
    %v517 = vadd.s32 %v500, 3
    %v518 = vand.u32 %v517, 3
    %vm519 = vcmp.lt.s32.totalorder %v518, 2
    %vm520 = vcmp.eq.s32.totalorder %v518, 0
    %v521 = vxor.u32 %v515, 2147483648
    %v522 = vsel %vm520, %v507, %v521
    %vm523 = vcmp.eq.s32.totalorder %v518, 2
    %v524 = vxor.u32 %v507, 2147483648
    %v525 = vsel %vm523, %v524, %v515
    %v526 = vsel %vm519, %v522, %v525
    %v527 = vsel %vm516, nan, %v526
    %v528 = vand.u32 2147483647, %v51
    %vm529 = vcmp.le.f32.partialorder %v528, 0.7853982
    %vm530 = vcmp.lt.s32.totalorder %v51, 0
    %v531 = vand.u32 %v51, 2139095040
    %v532 = vshrl.u32 %v531, 23
    %v533 = vsub.s32 %v532, 127
    %v534 = vand.u32 2147483647, %v51
    %v535 = vand.u32 %v534, 8388607
    %v536 = vor.u32 %v535, 8388608
    %v537 = vsub.s32 0, %v536
    %v538 = vadd.s32 %v533, 1
    %vm539 = vcmp.gt.s32.totalorder %v538, 0
    %v540 = vsel %vm539, %v538, 0
    %v541 = vshrl.u32 %v540, 5
    %v542 = vand.u32 %v540, 31
    %v543 = vsub.s32 32, %v542
    %v544 = vshrl.u32 683565275, %v543
    %v545 = vshll.u32 683565275, %v542
    %v546 = vshrl.u32 2475754826, %v543
    %v547 = vor.u32 %v545, %v546
    %v548 = vshll.u32 2475754826, %v542
    %v549 = vshrl.u32 2131351028, %v543
    %v550 = vor.u32 %v548, %v549
    %v551 = vshll.u32 2131351028, %v542
    %v552 = vshrl.u32 2102212464, %v543
    %v553 = vor.u32 %v551, %v552
    %v554 = vshll.u32 2102212464, %v542
    %v555 = vshrl.u32 920167782, %v543
    %v556 = vor.u32 %v554, %v555
    %v557 = vshll.u32 920167782, %v542
    %v558 = vshrl.u32 1326507024, %v543
    %v559 = vor.u32 %v557, %v558
    %vm560 = vcmp.lt.s32.totalorder %v541, 1
    %vm561 = vcmp.lt.s32.totalorder %v541, 2
    %vm562 = vcmp.lt.s32.totalorder %v541, 3
    %vm563 = vcmp.lt.s32.totalorder %v541, 4
    %v564 = vsel %vm560, %v544, %v547
    %v565 = vsel %vm563, %v553, 2102212464
    %v566 = vsel %vm562, %v550, %v565
    %v567 = vsel %vm561, %v564, %v566
    %v568 = vsel %vm560, %v547, %v550
    %v569 = vsel %vm563, %v556, 920167782
    %v570 = vsel %vm562, %v553, %v569
    %v571 = vsel %vm561, %v568, %v570
    %v572 = vsel %vm560, %v550, %v553
    %v573 = vsel %vm563, %v559, 1326507024
    %v574 = vsel %vm562, %v556, %v573
    %v575 = vsel %vm561, %v572, %v574
    %v576 = vshll.u32 %v536, 8
    %v577 = vand.u32 %v576, 65535
    %v578 = vshrl.u32 %v576, 16
    %v579 = vand.u32 %v575, 65535
    %v580 = vshrl.u32 %v575, 16
    %v581 = vmul.u32 %v577, %v579
    %v582 = vmul.u32 %v577, %v580
    %v583 = vmul.u32 %v578, %v579
    %v584 = vmul.u32 %v578, %v580
    %v585 = vshll.u32 %v582, 16
    %v586 = vshrl.u32 %v582, 16
    %v587 = vshll.u32 %v583, 16
    %v588 = vshrl.u32 %v583, 16
    %vm589 = vc.u32 %v581, %v585
    %v590 = vsel %vm589, 1, 0
    %v591 = vadd.s32 %v581, %v585
    %v592 = vadd.s32 %v584, %v590
    %vm593 = vc.u32 %v591, %v587
    %v594 = vsel %vm593, 1, 0
    %v595 = vadd.s32 %v591, %v587
    %v596 = vadd.s32 %v592, %v594
    %v597 = vadd.s32 %v596, %v586
    %v598 = vadd.s32 %v597, %v588
    %v599 = vand.u32 %v576, 65535
    %v600 = vshrl.u32 %v576, 16
    %v601 = vand.u32 %v571, 65535
    %v602 = vshrl.u32 %v571, 16
    %v603 = vmul.u32 %v599, %v601
    %v604 = vmul.u32 %v599, %v602
    %v605 = vmul.u32 %v600, %v601
    %v606 = vmul.u32 %v600, %v602
    %v607 = vshll.u32 %v604, 16
    %v608 = vshrl.u32 %v604, 16
    %v609 = vshll.u32 %v605, 16
    %v610 = vshrl.u32 %v605, 16
    %vm611 = vc.u32 %v603, %v607
    %v612 = vsel %vm611, 1, 0
    %v613 = vadd.s32 %v603, %v607
    %v614 = vadd.s32 %v606, %v612
    %vm615 = vc.u32 %v613, %v609
    %v616 = vsel %vm615, 1, 0
    %v617 = vadd.s32 %v613, %v609
    %v618 = vadd.s32 %v614, %v616
    %v619 = vadd.s32 %v618, %v608
    %v620 = vadd.s32 %v619, %v610
    %v621 = vmul.u32 %v576, %v567
    %v622 = vadd.s32 %v598, %v617
    %vm623 = vc.u32 %v598, %v617
    %v624 = vadd.s32 %v620, 1
    %v625 = vsel %vm623, %v624, %v620
    %v626 = vadd.s32 %v621, %v625
    %v627 = vadd.s32 %v626, 536870912
    %v628 = vshrl.u32 %v627, 30
    %v629 = vshll.u32 %v628, 30
    %v630 = vsub.s32 %v626, %v629
    %vm631 = vcmp.lt.s32.totalorder %v630, 0
    %v632 = vsub.s32 0, %v630
    %v633 = vsel %vm631, %v632, %v630
    %v634 = vclz %v633
    %v635 = vsub.s32 %v634, 2
    %vm636 = vcmp.gt.s32.totalorder 0, %v635
    %v637 = vsel %vm636, 0, %v635
    %v638 = vsub.s32 32, %v637
    %v639 = vshll.u32 %v630, %v637
    %v640 = vshrl.u32 %v622, %v638
    %v641 = vor.u32 %v639, %v640
    %v642 = vsub.s32 4294967266, %v637
    %v643 = vadd.s32 %v642, 127
    %v644 = vshll.u32 %v643, 23
    %v645 = vor.u32 4788187, %v644
    %v646 = vand.u32 2147483647, %v645
    %v648 = vcvt.s32.f32 %v641
    %v649 = vmul.f32 %v648, %v646
    %v650 = vxor.u32 %v649, 2147483648
    %v651 = vsel %vm530, %v650, %v649
    %v652 = vsub.s32 4, %v628
    %v653 = vsel %vm530, %v652, %v628
    %v654 = vsel %vm529, %v51, %v651
    %v655 = vsel %vm529, 0, %v653
    %v656 = vmul.f32 %v654, %v654
    %v657 = vmul.f32 %v656, -0.001358992
    %v658 = vadd.f32 %v657, 0.041655596
    %v659 = vmul.f32 %v656, %v658
    %v660 = vadd.f32 %v659, -0.4999988
    %v661 = vmul.f32 %v656, %v660
    %v662 = vadd.f32 1.0, %v661
    %v663 = vmul.f32 %v654, %v654
    %v664 = vmul.f32 %v663, -0.00019511016
    %v665 = vadd.f32 %v664, 0.008332121
    %v666 = vmul.f32 %v663, %v665
    %v667 = vadd.f32 %v666, -0.16666654
    %v668 = vmul.f32 %v663, %v667
    %v669 = vadd.f32 %v668, 1.0
    %v670 = vmul.f32 %v669, %v654
    %vm671 = vweird.f32 %v51
    %v672 = vadd.s32 %v655, 3
    %v673 = vand.u32 %v672, 3
    %vm674 = vcmp.lt.s32.totalorder %v673, 2
    %vm675 = vcmp.eq.s32.totalorder %v673, 0
    %v676 = vxor.u32 %v670, 2147483648
    %v677 = vsel %vm675, %v662, %v676
    %vm678 = vcmp.eq.s32.totalorder %v673, 2
    %v679 = vxor.u32 %v662, 2147483648
    %v680 = vsel %vm678, %v679, %v670
    %v681 = vsel %vm674, %v677, %v680
    %v682 = vsel %vm671, nan, %v681
    %v683 = vmul.f32 %v52, %v527
    %v684 = vmul.f32 %v53, %v682
    %v685 = vmul.f32 %v683, 0.1
    %v686 = vmul.f32 %v684, 0.1
    %v687 = vadd.f32 %v47, %v685
    %v688 = vadd.f32 %v48, %v686
    %s689 = scalar_lea.vmem [#allocation7], 16
    %690 = vst [vmem:[%s689] sm:$0xff] %v687
    %691 = vst [vmem:[%s689 + $0x8] sm:$0xff] %v688
    %v692 = vmul.f32 %v55, 0.1
    %v693 = vmul.f32 %v56, 0.1
    %v694 = vadd.f32 %v50, %v692
    %v695 = vadd.f32 %v51, %v693
    %s696 = scalar_lea.vmem [#allocation7], 32
    %697 = vst [vmem:[%s696] sm:$0xff] %v694
    %698 = vst [vmem:[%s696 + $0x8] sm:$0xff] %v695
    // Predicated region
    $region18: #{tpu_custom_call.1} parent=1 // pred_check
      _
    $region19: #{tpu_custom_call.1} parent=1 // pred_check_branch
      %700 = sbr.rel (0) target = $region21
    $region20: #{tpu_custom_call.1} parent=1 // pred_region
      %702 = vsyncadd [#allocation4], 0
      %s703 = sshll.u32 [#allocation7], 4
      %s704 = int_to_ptr.vmem [resolvable:$true] %s703
      %s705 = sshll.u32 %s2, 4
      %s706 = int_to_ptr.hbm [resolvable:$true] %s705
      %711 = dma.vmem_to_hbm [thread:$0]  %s704, 768, %s706, [#allocation4], 128, 128, 8
    $region21: #{tpu_custom_call.1} parent=1 // pred_fallthru
      _
    // Predicated region
    $region22: #{tpu_custom_call.1} parent=1 // pred_check
      _
    $region23: #{tpu_custom_call.1} parent=1 // pred_check_branch
      %713 = sbr.rel (0) target = $region25
    $region24: #{tpu_custom_call.1} parent=1 // pred_region
      %715 = dma.done [#allocation4], 768
    $region25: #{tpu_custom_call.1} parent=1 // pred_fallthru
      _
    %716 = vsyncpa [#allocation3], 1
    %717 = vsyncpa [#allocation6], 1
    %718 = vsyncpa [#allocation4], 1

</llo_original>
